<compile_context>
chip_gen: v7x
topology: tpu7x:2x2x1
jax: 0.10.0
libtpu: 0.0.40
codegen_flags: <defaults>
</compile_context>

<pallas_src>
import math

import jax
import jax.numpy as jnp
from jax.experimental import pallas as pl
from jax.experimental.pallas import tpu as pltpu


_LANE = 128
_MIN_KERNEL_ELEMS = 8 * _LANE            # below one (8,128) tile: reshape only
_MAX_BLOCK_BYTES = 16 * 1024 * 1024      # cap per-block bytes (v5e/v6e)
_MIN_BLOCK_BYTES = 1 * 1024 * 1024
_COL_CANDIDATES = (8192, 4096, 2048, 1024, 512, 256, _LANE)


def _copy_kernel(x_ref, o_ref):
    # Identity copy of the current (tr, cols) tile.
    o_ref[...] = x_ref[...]


def _cdiv(a, b):
    return -(-a // b)


def _resolve_shape(total_per_batch, shape):
    """Resolve a possible -1 entry, mimicking torch.view semantics."""
    shape = list(shape)
    if -1 in shape:
        idx = shape.index(-1)
        known = 1
        for i, s in enumerate(shape):
            if i != idx:
                known *= s
        assert total_per_batch % known == 0, "view shape incompatible with input"
        shape[idx] = total_per_batch // known
    assert math.prod(shape) == total_per_batch, "view shape incompatible with input"
    return tuple(shape)


def _vmem_capacity_bytes():
    """Trace-time VMEM capacity query; conservative (v7x = 64 MiB) fallback."""
    try:
        return int(pltpu.get_tpu_info().vmem_capacity_bytes)
    except Exception:
        return 64 * 1024 * 1024


def _block_budget():
    """Generation-aware block size and scoped-VMEM limit.

    In flight ~= 4 x block (input + output, each double-buffered).  Leave
    ~25% of physical VMEM as headroom:
      v7x (64 MiB):  ~12 MiB blocks, ~48 MiB in flight
      v5e/v6e (128): 16 MiB blocks (capped), ~64 MiB in flight
    """
    vmem_cap = _vmem_capacity_bytes()
    in_flight = (vmem_cap * 3) // 4
    blk = min(in_flight // 4, _MAX_BLOCK_BYTES)
    blk = max(blk, _MIN_BLOCK_BYTES)
    vmem_limit = min(vmem_cap, 4 * blk + (8 << 20))
    return blk, vmem_limit


def _choose_cols(total):
    """Widest lane-dense row width (multiple of 128) dividing `total`."""
    for c in _COL_CANDIDATES:
        if total % c == 0:
            return c
    return None


def _choose_row_block(rows, cols, itemsize, block_bytes, sublane):
    """Rows per block: dtype-tile aligned, ~block_bytes, even grid if possible."""
    row_bytes = cols * itemsize
    tr = (block_bytes // max(row_bytes, 1)) // sublane * sublane
    tr = max(tr, sublane)
    if tr >= rows:
        return rows  # whole slab in one full-extent block (single grid step)
    # Best effort: even grid step count so v7x's two TensorCores stay balanced.
    steps = _cdiv(rows, tr)
    if steps % 2 == 1:
        alt = _cdiv(_cdiv(rows, steps + 1), sublane) * sublane
        if sublane <= alt < rows and _cdiv(rows, alt) % 2 == 0:
            tr = alt
    return tr


def _identity_copy_2d(flat, total, itemsize):
    """Identity copy of a 1-D array through VMEM with lane-dense tiling."""
    cols = _choose_cols(total)
    rows = total // cols
    x2d = jnp.reshape(flat, (rows, cols))

    # Native tile rows: f32 -> 8, bf16 -> 16, int8/fp8 -> 32.
    sublane = max(8, 32 // itemsize)
    block_bytes, vmem_limit = _block_budget()
    tr = _choose_row_block(rows, cols, itemsize, block_bytes, sublane)
    grid = (_cdiv(rows, tr),)

    out2d = pl.pallas_call(
        _copy_kernel,
        out_shape=jax.ShapeDtypeStruct((rows, cols), flat.dtype),
        grid_spec=pltpu.PrefetchScalarGridSpec(
            num_scalar_prefetch=0,
            grid=grid,
            in_specs=[pl.BlockSpec((tr, cols), lambda i: (i, 0))],
            out_specs=pl.BlockSpec((tr, cols), lambda i: (i, 0)),
        ),
        compiler_params=pltpu.CompilerParams(
            dimension_semantics=("parallel",),
            vmem_limit_bytes=vmem_limit,
        ),
        cost_estimate=pl.CostEstimate(
            flops=0,
            transcendentals=0,
            bytes_accessed=2 * total * itemsize,
        ),
        # No input_output_aliases: without buffer donation at the jit boundary
        # XLA would insert a defensive full copy of x2d before the kernel,
        # doubling HBM traffic.  Callers that donate x can re-enable it.
    )(x2d)
    return jnp.reshape(out2d, (total,))


def pallas_view(x, *shape):
    """Equivalent of View(*shape).forward(x) == x.view(x.shape[0], *shape)."""
    b = x.shape[0]
    n = math.prod(x.shape[1:]) if x.ndim > 1 else 1
    target = _resolve_shape(n, shape)
    total = b * n
    itemsize = jnp.dtype(x.dtype).itemsize

    # Flatten (row-major == torch contiguous order) and run the lane-dense
    # identity copy.  Tiny or non-128-aligned element counts skip the kernel:
    # .view on contiguous memory is metadata-only, so a pure reshape is both
    # exact and strictly cheaper than any copy (and avoids the old
    # pad+slice fallback's extra HBM passes).
    flat = jnp.reshape(x, (total,))
    if total >= _MIN_KERNEL_ELEMS and total % _LANE == 0:
        flat = _identity_copy_2d(flat, total, itemsize)
    return jnp.reshape(flat, (b,) + target)


if __name__ == "__main__":
    key = jax.random.PRNGKey(0)
    # NCHW-style input, as a PyTorch conv stack would produce.
    x = jax.random.normal(key, (2, 4, 16, 16), dtype=jnp.float32)

    # View(16, 8, 8): 4*16*16 == 16*8*8 == 1024
    out = pallas_view(x, 16, 8, 8)
    out = jax.block_until_ready(out)

    # Correctness check against plain reshape (== torch .view on contiguous x).
    ref = jnp.reshape(x, (2, 16, 8, 8))
    assert out.shape == (2, 16, 8, 8)
    assert out.dtype == x.dtype
    assert bool(jnp.all(out == ref))

    # Also exercise the -1 path: View(-1)
    out_flat = jax.block_until_ready(pallas_view(x, -1))
    assert out_flat.shape == (2, 1024)
    assert bool(jnp.all(out_flat == jnp.reshape(x, (2, 1024))))

    # bf16 path (dtype-aware sublane alignment).
    xb = jax.random.normal(jax.random.PRNGKey(0), (2, 8, 32, 32),
                           dtype=jnp.bfloat16)
    out_b = jax.block_until_ready(pallas_view(xb, 32, 16, 16))
    assert out_b.shape == (2, 32, 16, 16)
    assert out_b.dtype == xb.dtype
    assert bool(jnp.all(out_b == jnp.reshape(xb, (2, 32, 16, 16))))

    print("KERNEL_OK")
</pallas_src>

<mosaic_0001>
module attributes {stable_mosaic.version = 11 : i64} {
  func.func @_copy_kernel(%arg0: i32, %arg1: memref<1x2048xf32, #tpu.memory_space<vmem>>, %arg2: memref<1x2048xf32, #tpu.memory_space<vmem>>) attributes {dimension_semantics = [#tpu.dimension_semantics<parallel>], iteration_bounds = array<i64: 1>, scalar_prefetch = 0 : i64, scratch_operands = 0 : i64, tpu.core_type = #tpu.core_type<tc>, window_params = [{transform_indices = @transform_0, window_bounds = array<i64: 1, 2048>}, {transform_indices = @transform_1, window_bounds = array<i64: 1, 2048>}]} {
    %c0 = arith.constant 0 : index
    %c0_0 = arith.constant 0 : index
    %0 = vector.load %arg1[%c0, %c0_0] : memref<1x2048xf32, #tpu.memory_space<vmem>>, vector<1x2048xf32>
    %c0_1 = arith.constant 0 : index
    %c0_2 = arith.constant 0 : index
    %1 = vector.load %arg2[%c0_1, %c0_2] : memref<1x2048xf32, #tpu.memory_space<vmem>>, vector<1x2048xf32>
    tpu.vector_store %arg2[%c0_1, %c0_2], %0 {strides = array<i32>} : memref<1x2048xf32, #tpu.memory_space<vmem>>, vector<1x2048xf32>,
    return
  }
  func.func @transform_0(%arg0: i32) -> (i32, i32) {
    %c0_i32 = arith.constant 0 : i32
    %c0_i32_0 = arith.constant 0 : i32
    return %arg0, %c0_i32 : i32, i32
  }
  func.func @transform_1(%arg0: i32) -> (i32, i32) {
    %c0_i32 = arith.constant 0 : i32
    %c0_i32_0 = arith.constant 0 : i32
    return %arg0, %c0_i32 : i32, i32
  }
}

</mosaic_0001>

<llo_original>
// kernel: tpu_custom_call.1
$region0: #{tpu_custom_call.1}
  #allocation0 [shape = 'u32[]', space=smem, size = 0x4, offset = 0x4, fixed_abs, tag = 'smem constant byte address 0x4 - core index']
  #allocation1 [shape = 'u32[144,128]{1,0:T(1,128)}', space=vmem, size = 0x12000, scoped, tag = 'internal scratch']
  %s0 = inlined_call_operand.hbm [shape: f32[1,2048], index: 0, kind: input, shape index: {}]
  %s1 = inlined_call_operand.hbm [shape: f32[1,2048], index: 1, kind: output, shape index: {}]
  %s2 = sld [smem:[#allocation0]]
  $region18: #{tpu_custom_call.1} parent=0
    _
  %s4 = ssub.s32 1, %s2
  %s5 = scalar_select 0, %s4, %s2
  $region1: #{tpu_custom_call.1} parent=0
    #allocation2 [shape = 'u8[8192]{0}', space=vmem, size = 0x2000, scoped, tag = 'input window, operand 0, single buffered']
    #allocation3 [shape = 's32[1]{0}', space=sflag, size = 0x4, scoped, tag = 'scoped memory for tpu_custom_call.1']
    #allocation4 [shape = 's32[1]{0}', space=sflag, size = 0x4, scoped, tag = 'scoped memory for tpu_custom_call.1']
    #allocation5 [shape = 'u8[8192]{0}', space=vmem, size = 0x2000, scoped, tag = 'output window, operand 0, single buffered']
    %6 = vsyncpa [#allocation3], 0
    %7 = vsyncpa [#allocation4], 0
    // Predicated region
    $region2: #{tpu_custom_call.1} parent=1 // pred_check
      _
    $region3: #{tpu_custom_call.1} parent=1 // pred_check_branch
      %9 = sbr.rel (0) target = $region5
    $region4: #{tpu_custom_call.1} parent=1 // pred_region
      %s11 = ssub.s32 256, 256
      %12 = vsyncadd [#allocation3], %s11
      %s14 = sshll.u32 [#allocation2], 4
      %s15 = int_to_ptr.vmem [resolvable:$true] %s14
      %17 = dma.hbm_to_vmem [thread:$0]  %s0, 256, %s15, [#allocation3]
    $region5: #{tpu_custom_call.1} parent=1 // pred_fallthru
      _
    // Predicated region
    $region6: #{tpu_custom_call.1} parent=1 // pred_check
      _
    $region7: #{tpu_custom_call.1} parent=1 // pred_check_branch
      %19 = sbr.rel (0) target = $region9
    $region8: #{tpu_custom_call.1} parent=1 // pred_region
      %20 = dma.done [#allocation3], 256
    $region9: #{tpu_custom_call.1} parent=1 // pred_fallthru
      _
    %v21 = vld [vmem:[#allocation2] sm:$0xff]
    %v22 = vld [vmem:[#allocation2 + $0x8] sm:$0xff]
    %23 = vst [vmem:[#allocation5] sm:$0xff] %v21
    %24 = vst [vmem:[#allocation5 + $0x8] sm:$0xff] %v22
    // Predicated region
    $region10: #{tpu_custom_call.1} parent=1 // pred_check
      _
    $region11: #{tpu_custom_call.1} parent=1 // pred_check_branch
      %26 = sbr.rel (0) target = $region13
    $region12: #{tpu_custom_call.1} parent=1 // pred_region
      %s28 = ssub.s32 256, 256
      %29 = vsyncadd [#allocation4], %s28
      %s31 = sshll.u32 [#allocation5], 4
      %s32 = int_to_ptr.vmem [resolvable:$true] %s31
      %34 = dma.vmem_to_hbm [thread:$0]  %s32, 256, %s1, [#allocation4]
    $region13: #{tpu_custom_call.1} parent=1 // pred_fallthru
      _
    // Predicated region
    $region14: #{tpu_custom_call.1} parent=1 // pred_check
      _
    $region15: #{tpu_custom_call.1} parent=1 // pred_check_branch
      %36 = sbr.rel (0) target = $region17
    $region16: #{tpu_custom_call.1} parent=1 // pred_region
      %37 = dma.done [#allocation4], 256
    $region17: #{tpu_custom_call.1} parent=1 // pred_fallthru
      _
    %38 = vsyncpa [#allocation3], 1
    %39 = vsyncpa [#allocation4], 1

</llo_original>
